<compile_context>
chip_gen: v7x
topology: tpu7x:2x2x1
jax: 0.10.0
libtpu: 0.0.40
codegen_flags: <defaults>
</compile_context>

<pallas_src>
import jax
import jax.numpy as jnp
from jax import lax
from jax.experimental import pallas as pl
from jax.experimental.pallas import tpu as pltpu


def _round_up(n, m):
    return ((n + m - 1) // m) * m


def _mlp_kernel(x_ref, w1_ref, b1_ref, w2_ref, b2_ref, o_ref):
    x = x_ref[...]                      # (TB, in)
    w1 = w1_ref[...]                    # (in, hidden)
    dt = jnp.promote_types(x.dtype, w1.dtype)

    # fc1, transposed layout: hT = W1^T @ x^T -> (hidden, TB), f32 accumulate
    # on the MXU.  Batch sits on the 128-lane axis -> dense vregs.
    hT = lax.dot_general(
        w1.astype(dt), x.astype(dt),
        dimension_numbers=(((0,), (1,)), ((), ())),
        preferred_element_type=jnp.float32)
    # Bias + ReLU in f32 on the VPU (v5e has no bf16 VALU).
    hT = jnp.maximum(hT + b1_ref[...].astype(jnp.float32), 0.0)

    # fc2: yT = W2^T @ hT -> (out, TB).  Hidden stays in f32 (accuracy fix).
    yT = lax.dot_general(
        w2_ref[...].astype(jnp.float32), hT,
        dimension_numbers=(((0,), (0,)), ((), ())),
        preferred_element_type=jnp.float32)
    yT = yT + b2_ref[...].astype(jnp.float32)

    o_ref[...] = yT.astype(o_ref.dtype)  # (out, TB): lane-dense stores.


def energy_efficiency_forward(x, w1, b1, w2, b2, *, block_b=8192,
                              transposed_output=False):
    """Forward pass of EnergyEfficiencyModel.

    x : (B, in_features)
    w1: (in_features, hidden);  b1: (hidden,) (or any shape with `hidden` elems)
    w2: (hidden, out_features); b2: (out_features,)

    Returns (B, out_features) in x.dtype (or (out_features, B) if
    transposed_output=True, which skips the final wrapper transpose).
    Works for any B; the ragged last batch tile is handled by Pallas padding.
    """
    B, in_size = x.shape
    hid_size = w1.shape[1]
    out_size = w2.shape[1]

    # Biases as columns: (hidden, 1) / (out, 1) broadcast across the lane axis.
    b1 = jnp.reshape(b1, (hid_size, 1))
    b2 = jnp.reshape(b2, (out_size, 1))

    # Batch tile: multiple of 128 so the (out, tb) output block is lane-aligned.
    tb = _round_up(min(block_b, B), 128)
    # v7x (2 TensorCores): keep >= 2 grid steps when the batch is big enough.
    if B > 256:
        tb = min(tb, _round_up(pl.cdiv(B, 2), 128))
    grid = (pl.cdiv(B, tb),)   # ragged last block: Pallas pads in, drops OOB out.

    x_item = jnp.dtype(x.dtype).itemsize
    w_item = jnp.dtype(w1.dtype).itemsize
    cost = pl.CostEstimate(
        flops=2 * B * (in_size * hid_size + hid_size * out_size),
        transcendentals=0,
        bytes_accessed=(B * in_size * x_item                    # x read
                        + B * out_size * x_item                 # out write
                        + (in_size * hid_size + hid_size * out_size
                           + hid_size + out_size) * w_item),    # params
    )

    out_t = pl.pallas_call(
        _mlp_kernel,
        out_shape=jax.ShapeDtypeStruct((out_size, B), x.dtype),
        grid=grid,
        in_specs=[
            pl.BlockSpec((tb, in_size), lambda i: (i, 0)),         # x: streamed
            pl.BlockSpec((in_size, hid_size), lambda i: (0, 0)),   # w1: resident
            pl.BlockSpec((hid_size, 1), lambda i: (0, 0)),         # b1: resident
            pl.BlockSpec((hid_size, out_size), lambda i: (0, 0)),  # w2: resident
            pl.BlockSpec((out_size, 1), lambda i: (0, 0)),         # b2: resident
        ],
        out_specs=pl.BlockSpec((out_size, tb), lambda i: (0, i)),  # lane-dense
        compiler_params=pltpu.CompilerParams(
            dimension_semantics=("parallel",),   # v7x: shard batch over 2 TCs
        ),
        cost_estimate=cost,
    )(x, w1, b1, w2, b2)

    if transposed_output:
        return out_t                     # (out, B)
    return jnp.transpose(out_t)          # (B, out): matches nn.Module forward


def _reference(x, w1, b1, w2, b2):
    h = jnp.maximum(x.astype(jnp.float32) @ w1.astype(jnp.float32)
                    + b1.astype(jnp.float32).reshape(1, -1), 0.0)
    return (h @ w2.astype(jnp.float32)
            + b2.astype(jnp.float32).reshape(1, -1))


def _make_params(key, input_size, hidden_size, output_size, dtype=jnp.float32):
    kw1, kb1, kw2, kb2 = jax.random.split(key, 4)
    bound1 = 1.0 / (input_size ** 0.5)
    bound2 = 1.0 / (hidden_size ** 0.5)
    w1 = jax.random.uniform(kw1, (input_size, hidden_size),
                            minval=-bound1, maxval=bound1, dtype=jnp.float32)
    b1 = jax.random.uniform(kb1, (hidden_size,),
                            minval=-bound1, maxval=bound1, dtype=jnp.float32)
    w2 = jax.random.uniform(kw2, (hidden_size, output_size),
                            minval=-bound2, maxval=bound2, dtype=jnp.float32)
    b2 = jax.random.uniform(kb2, (output_size,),
                            minval=-bound2, maxval=bound2, dtype=jnp.float32)
    return (w1.astype(dtype), b1.astype(dtype),
            w2.astype(dtype), b2.astype(dtype))


if __name__ == "__main__":
    input_size, hidden_size, output_size = 16, 32, 4
    key = jax.random.PRNGKey(0)
    kp, kx1, kx2, kx3 = jax.random.split(key, 4)

    w1, b1, w2, b2 = _make_params(kp, input_size, hidden_size, output_size)

    # --- Case 1: exact single tile (B == tb == 128). ---
    x1 = jax.random.normal(kx1, (128, input_size), dtype=jnp.float32)
    o1 = jax.block_until_ready(energy_efficiency_forward(x1, w1, b1, w2, b2))
    r1 = _reference(x1, w1, b1, w2, b2)
    assert o1.shape == (128, output_size)
    assert jnp.allclose(o1, r1, atol=1e-4, rtol=1e-4)

    # --- Case 2: ragged batch -> 2 grid steps, padded last block (no jnp.pad). ---
    x2 = jax.random.normal(kx2, (1030, input_size), dtype=jnp.float32)
    o2 = jax.block_until_ready(energy_efficiency_forward(x2, w1, b1, w2, b2))
    r2 = _reference(x2, w1, b1, w2, b2)
    assert o2.shape == (1030, output_size)
    assert jnp.allclose(o2, r2, atol=1e-4, rtol=1e-4)

    # --- Case 3: bf16 streaming I/O, f32 accumulate / f32 hidden. ---
    w1b, b1b, w2b, b2b = (w1.astype(jnp.bfloat16), b1.astype(jnp.bfloat16),
                          w2.astype(jnp.bfloat16), b2.astype(jnp.bfloat16))
    x3 = jax.random.normal(kx3, (512, input_size), dtype=jnp.bfloat16)
    o3 = jax.block_until_ready(energy_efficiency_forward(x3, w1b, b1b, w2b, b2b))
    r3 = _reference(x3, w1b, b1b, w2b, b2b)
    assert o3.shape == (512, output_size)
    assert jnp.allclose(o3.astype(jnp.float32), r3, atol=5e-2, rtol=5e-2)

    print("KERNEL_OK")
</pallas_src>

<mosaic_0001>
module attributes {stable_mosaic.version = 11 : i64} {
  func.func @_mlp_kernel(%arg0: i32, %arg1: memref<128x16xf32, #tpu.memory_space<vmem>>, %arg2: memref<16x32xf32, #tpu.memory_space<vmem>>, %arg3: memref<32x1xf32, #tpu.memory_space<vmem>>, %arg4: memref<32x4xf32, #tpu.memory_space<vmem>>, %arg5: memref<4x1xf32, #tpu.memory_space<vmem>>, %arg6: memref<4x128xf32, #tpu.memory_space<vmem>>) attributes {dimension_semantics = [#tpu.dimension_semantics<parallel>], iteration_bounds = array<i64: 1>, scalar_prefetch = 0 : i64, scratch_operands = 0 : i64, tpu.core_type = #tpu.core_type<tc>, window_params = [{transform_indices = @transform_0, window_bounds = array<i64: 128, 16>}, {pipeline_mode = #tpu.pipeline_mode<synchronous>, transform_indices = @transform_1, window_bounds = array<i64: 16, 32>}, {pipeline_mode = #tpu.pipeline_mode<synchronous>, transform_indices = @transform_2, window_bounds = array<i64: 32, 1>}, {pipeline_mode = #tpu.pipeline_mode<synchronous>, transform_indices = @transform_3, window_bounds = array<i64: 32, 4>}, {pipeline_mode = #tpu.pipeline_mode<synchronous>, transform_indices = @transform_4, window_bounds = array<i64: 4, 1>}, {transform_indices = @transform_5, window_bounds = array<i64: 4, 128>}]} {
    %c0 = arith.constant 0 : index
    %c0_0 = arith.constant 0 : index
    %0 = vector.load %arg1[%c0, %c0_0] : memref<128x16xf32, #tpu.memory_space<vmem>>, vector<128x16xf32>
    %c0_1 = arith.constant 0 : index
    %c0_2 = arith.constant 0 : index
    %1 = vector.load %arg2[%c0_1, %c0_2] : memref<16x32xf32, #tpu.memory_space<vmem>>, vector<16x32xf32>
    %cst = arith.constant dense<0.000000e+00> : vector<32x128xf32>
    %2 = tpu.matmul %1, %0, %cst {dimension_numbers = #tpu.dot_dimension_numbers<[0], [1], [1], [0], [0, 1, 1, 0], [], []>} : vector<16x32xf32>, vector<128x16xf32>, vector<32x128xf32> -> vector<32x128xf32>
    %c0_3 = arith.constant 0 : index
    %c0_4 = arith.constant 0 : index
    %3 = vector.load %arg3[%c0_3, %c0_4] : memref<32x1xf32, #tpu.memory_space<vmem>>, vector<32x1xf32>
    %4 = vector.broadcast %3 : vector<32x1xf32> to vector<32x128xf32>
    %5 = arith.addf %2, %4 : vector<32x128xf32>
    %cst_5 = arith.constant 0.000000e+00 : f32
    %6 = vector.broadcast %cst_5 : f32 to vector<32x128xf32>
    %7 = arith.maximumf %5, %6 : vector<32x128xf32>
    %c0_6 = arith.constant 0 : index
    %c0_7 = arith.constant 0 : index
    %8 = vector.load %arg4[%c0_6, %c0_7] : memref<32x4xf32, #tpu.memory_space<vmem>>, vector<32x4xf32>
    %cst_8 = arith.constant dense<0.000000e+00> : vector<4x128xf32>
    %9 = tpu.matmul %8, %7, %cst_8 {dimension_numbers = #tpu.dot_dimension_numbers<[0], [0], [1], [1], [0, 1, 1, 1], [], []>} : vector<32x4xf32>, vector<32x128xf32>, vector<4x128xf32> -> vector<4x128xf32>
    %c0_9 = arith.constant 0 : index
    %c0_10 = arith.constant 0 : index
    %10 = vector.load %arg5[%c0_9, %c0_10] : memref<4x1xf32, #tpu.memory_space<vmem>>, vector<4x1xf32>
    %11 = vector.broadcast %10 : vector<4x1xf32> to vector<4x128xf32>
    %12 = arith.addf %9, %11 : vector<4x128xf32>
    %c0_11 = arith.constant 0 : index
    %c0_12 = arith.constant 0 : index
    %13 = vector.load %arg6[%c0_11, %c0_12] : memref<4x128xf32, #tpu.memory_space<vmem>>, vector<4x128xf32>
    tpu.vector_store %arg6[%c0_11, %c0_12], %12 {strides = array<i32>} : memref<4x128xf32, #tpu.memory_space<vmem>>, vector<4x128xf32>,
    return
  }
  func.func @transform_0(%arg0: i32) -> (i32, i32) {
    %c0_i32 = arith.constant 0 : i32
    %c0_i32_0 = arith.constant 0 : i32
    return %arg0, %c0_i32 : i32, i32
  }
  func.func @transform_1(%arg0: i32) -> (i32, i32) {
    %c0_i32 = arith.constant 0 : i32
    %c0_i32_0 = arith.constant 0 : i32
    %c0_i32_1 = arith.constant 0 : i32
    return %c0_i32, %c0_i32_0 : i32, i32
  }
  func.func @transform_2(%arg0: i32) -> (i32, i32) {
    %c0_i32 = arith.constant 0 : i32
    %c0_i32_0 = arith.constant 0 : i32
    %c0_i32_1 = arith.constant 0 : i32
    return %c0_i32, %c0_i32_0 : i32, i32
  }
  func.func @transform_3(%arg0: i32) -> (i32, i32) {
    %c0_i32 = arith.constant 0 : i32
    %c0_i32_0 = arith.constant 0 : i32
    %c0_i32_1 = arith.constant 0 : i32
    return %c0_i32, %c0_i32_0 : i32, i32
  }
  func.func @transform_4(%arg0: i32) -> (i32, i32) {
    %c0_i32 = arith.constant 0 : i32
    %c0_i32_0 = arith.constant 0 : i32
    %c0_i32_1 = arith.constant 0 : i32
    return %c0_i32, %c0_i32_0 : i32, i32
  }
  func.func @transform_5(%arg0: i32) -> (i32, i32) {
    %c0_i32 = arith.constant 0 : i32
    %c0_i32_0 = arith.constant 0 : i32
    return %c0_i32, %arg0 : i32, i32
  }
}

</mosaic_0001>

<llo_original>
// kernel: tpu_custom_call.1
$region0: #{tpu_custom_call.1}
  #allocation0 [shape = 'u32[]', space=smem, size = 0x4, offset = 0x4, fixed_abs, tag = 'smem constant byte address 0x4 - core index']
  #allocation1 [shape = 'u32[144,128]{1,0:T(1,128)}', space=vmem, size = 0x12000, scoped, tag = 'internal scratch']
  %s0 = inlined_call_operand.vmem [shape: f32[128,16], index: 0, kind: input, shape index: {}]
  %s1 = inlined_call_operand.vmem [shape: f32[16,32], index: 1, kind: input, shape index: {}]
  %s2 = inlined_call_operand.vmem [shape: f32[32,1], index: 2, kind: input, shape index: {}]
  %s3 = inlined_call_operand.vmem [shape: f32[32,4], index: 3, kind: input, shape index: {}]
  %s4 = inlined_call_operand.vmem [shape: f32[4,1], index: 4, kind: input, shape index: {}]
  %s5 = inlined_call_operand.hbm [shape: f32[4,128], index: 5, kind: output, shape index: {}]
  %s6 = sld [smem:[#allocation0]]
  $region30: #{tpu_custom_call.1} parent=0
    _
  %s8 = ssub.s32 1, %s6
  %s9 = scalar_select 0, %s8, %s6
  $region1: #{tpu_custom_call.1} parent=0
    #allocation2 [shape = 'u8[2048]{0}', space=vmem, size = 0x800, scoped, tag = 'output window, operand 0, single buffered']
    #allocation3 [shape = 's32[1]{0}', space=sflag, size = 0x4, scoped, tag = 'scoped memory for tpu_custom_call.1']
    %10 = vsyncpa [#allocation3], 0
    // Predicated region
    $region2: #{tpu_custom_call.1} parent=1 // pred_check
      _
    $region3: #{tpu_custom_call.1} parent=1 // pred_check_branch
      %12 = sbr.rel (0) target = $region5
    $region4: #{tpu_custom_call.1} parent=1 // pred_region
      _
    $region5: #{tpu_custom_call.1} parent=1 // pred_fallthru
      _
    // Predicated region
    $region6: #{tpu_custom_call.1} parent=1 // pred_check
      _
    $region7: #{tpu_custom_call.1} parent=1 // pred_check_branch
      %14 = sbr.rel (0) target = $region9
    $region8: #{tpu_custom_call.1} parent=1 // pred_region
      _
    $region9: #{tpu_custom_call.1} parent=1 // pred_fallthru
      _
    // Predicated region
    $region10: #{tpu_custom_call.1} parent=1 // pred_check
      _
    $region11: #{tpu_custom_call.1} parent=1 // pred_check_branch
      %16 = sbr.rel (0) target = $region13
    $region12: #{tpu_custom_call.1} parent=1 // pred_region
      _
    $region13: #{tpu_custom_call.1} parent=1 // pred_fallthru
      _
    // Predicated region
    $region14: #{tpu_custom_call.1} parent=1 // pred_check
      _
    $region15: #{tpu_custom_call.1} parent=1 // pred_check_branch
      %18 = sbr.rel (0) target = $region17
    $region16: #{tpu_custom_call.1} parent=1 // pred_region
      _
    $region17: #{tpu_custom_call.1} parent=1 // pred_fallthru
      _
    // Predicated region
    $region18: #{tpu_custom_call.1} parent=1 // pred_check
      _
    $region19: #{tpu_custom_call.1} parent=1 // pred_check_branch
      %20 = sbr.rel (0) target = $region21
    $region20: #{tpu_custom_call.1} parent=1 // pred_region
      _
    $region21: #{tpu_custom_call.1} parent=1 // pred_fallthru
      _
    %v21 = vld [vmem:[%s0] sm:$0xff]
    %v22 = vld [vmem:[%s0 + $0x8] sm:$0xff]
    %v23 = vld [vmem:[%s0 + $0x10] sm:$0xff]
    %v24 = vld [vmem:[%s0 + $0x18] sm:$0xff]
    %v25 = vld [vmem:[%s0 + $0x20] sm:$0xff]
    %v26 = vld [vmem:[%s0 + $0x28] sm:$0xff]
    %v27 = vld [vmem:[%s0 + $0x30] sm:$0xff]
    %v28 = vld [vmem:[%s0 + $0x38] sm:$0xff]
    %v29 = vld [vmem:[%s0 + $0x40] sm:$0xff]
    %v30 = vld [vmem:[%s0 + $0x48] sm:$0xff]
    %v31 = vld [vmem:[%s0 + $0x50] sm:$0xff]
    %v32 = vld [vmem:[%s0 + $0x58] sm:$0xff]
    %v33 = vld [vmem:[%s0 + $0x60] sm:$0xff]
    %v34 = vld [vmem:[%s0 + $0x68] sm:$0xff]
    %v35 = vld [vmem:[%s0 + $0x70] sm:$0xff]
    %v36 = vld [vmem:[%s0 + $0x78] sm:$0xff]
    %v37 = vld [vmem:[%s1] sm:$0xff]
    %v38 = vld [vmem:[%s1 + $0x8] sm:$0xff]
    %v39 = vld [vmem:[%s2] sm:$0xff]
    %v40 = vld [vmem:[%s2 + $0x8] sm:$0xff]
    %v41 = vld [vmem:[%s2 + $0x10] sm:$0xff]
    %v42 = vld [vmem:[%s2 + $0x18] sm:$0xff]
    %44 = vset.pattern.permute.xlu0 0
    %45 = vperm.xlu0 %44, %v39
    %v46 = vpop.permute.xlu0 %45
    %49 = vset.pattern.permute.xlu0 0
    %50 = vperm.xlu0 %49, %v40
    %v51 = vpop.permute.xlu0 %50
    %54 = vset.pattern.permute.xlu0 0
    %55 = vperm.xlu0 %54, %v41
    %v56 = vpop.permute.xlu0 %55
    %59 = vset.pattern.permute.xlu0 0
    %60 = vperm.xlu0 %59, %v42
    %v61 = vpop.permute.xlu0 %60
    %63 = vxpose.xlu0.b32.start [1/16] %v37, 128
    %64 = vxpose.xlu0.b32.cont [2/16] %v38, 128
    %65 = vxpose.xlu0.b32.cont [3/16] 0.0, 128
    %66 = vxpose.xlu0.b32.cont [4/16] 0.0, 128
    %67 = vxpose.xlu0.b32.cont [5/16] 0.0, 128
    %68 = vxpose.xlu0.b32.cont [6/16] 0.0, 128
    %69 = vxpose.xlu0.b32.cont [7/16] 0.0, 128
    %70 = vxpose.xlu0.b32.cont [8/16] 0.0, 128
    %71 = vxpose.xlu0.b32.cont [9/16] 0.0, 128
    %72 = vxpose.xlu0.b32.cont [10/16] 0.0, 128
    %73 = vxpose.xlu0.b32.cont [11/16] 0.0, 128
    %74 = vxpose.xlu0.b32.cont [12/16] 0.0, 128
    %75 = vxpose.xlu0.b32.cont [13/16] 0.0, 128
    %76 = vxpose.xlu0.b32.cont [14/16] 0.0, 128
    %77 = vxpose.xlu0.b32.cont [15/16] 0.0, 128
    %78 = vxpose.xlu0.b32.end [16/16] 0.0, 128
    %v79 = vpop.trf.xlu0
    %v80 = vpop.trf.xlu0
    %v81 = vpop.trf.xlu0
    %v82 = vpop.trf.xlu0
    %v83 = vpop.trf.xlu0
    %v84 = vpop.trf.xlu0
    %v85 = vpop.trf.xlu0
    %v86 = vpop.trf.xlu0
    %v87 = vpop.trf.xlu0
    %v88 = vpop.trf.xlu0
    %v89 = vpop.trf.xlu0
    %v90 = vpop.trf.xlu0
    %v91 = vpop.trf.xlu0
    %v92 = vpop.trf.xlu0
    %v93 = vpop.trf.xlu0
    %v94 = vpop.trf.xlu0
    %vm95 = vcmask 130048
    %v97 = vsel %vm95, %v79, 0
    %v100 = vsel %vm95, %v80, 0
    %v103 = vsel %vm95, %v81, 0
    %v106 = vsel %vm95, %v82, 0
    %v109 = vsel %vm95, %v21, 0
    %v112 = vsel %vm95, %v22, 0
    %v115 = vsel %vm95, %v23, 0
    %v118 = vsel %vm95, %v24, 0
    %v121 = vsel %vm95, %v25, 0
    %v124 = vsel %vm95, %v26, 0
    %v127 = vsel %vm95, %v27, 0
    %v130 = vsel %vm95, %v28, 0
    %v133 = vsel %vm95, %v29, 0
    %v136 = vsel %vm95, %v30, 0
    %v139 = vsel %vm95, %v31, 0
    %v142 = vsel %vm95, %v32, 0
    %v145 = vsel %vm95, %v33, 0
    %v148 = vsel %vm95, %v34, 0
    %v151 = vsel %vm95, %v35, 0
    %v154 = vsel %vm95, %v36, 0
    %156 = vmatprep.subr.mxu0 0.0
    %157 = vmatpush1.xpose.msra.mxu0 %v109
    %158 = vmatprep.subr.mxu0 0.0
    %159 = vmatpush1.xpose.msra.mxu0 %v112
    %160 = vmatprep.subr.mxu0 0.0
    %161 = vmatpush1.xpose.msra.mxu0 %v115
    %162 = vmatprep.subr.mxu0 0.0
    %163 = vmatpush1.xpose.msra.mxu0 %v118
    %164 = vmatprep.subr.mxu0 0.0
    %165 = vmatpush1.xpose.msra.mxu0 %v121
    %166 = vmatprep.subr.mxu0 0.0
    %167 = vmatpush1.xpose.msra.mxu0 %v124
    %168 = vmatprep.subr.mxu0 0.0
    %169 = vmatpush1.xpose.msra.mxu0 %v127
    %170 = vmatprep.subr.mxu0 0.0
    %171 = vmatpush1.xpose.msra.mxu0 %v130
    %172 = vmatprep.subr.mxu0 0.0
    %173 = vmatpush1.xpose.msra.mxu0 %v133
    %174 = vmatprep.subr.mxu0 0.0
    %175 = vmatpush1.xpose.msra.mxu0 %v136
    %176 = vmatprep.subr.mxu0 0.0
    %177 = vmatpush1.xpose.msra.mxu0 %v139
    %178 = vmatprep.subr.mxu0 0.0
    %179 = vmatpush1.xpose.msra.mxu0 %v142
    %180 = vmatprep.subr.mxu0 0.0
    %181 = vmatpush1.xpose.msra.mxu0 %v145
    %182 = vmatprep.subr.mxu0 0.0
    %183 = vmatpush1.xpose.msra.mxu0 %v148
    %184 = vmatprep.subr.mxu0 0.0
    %185 = vmatpush1.xpose.msra.mxu0 %v151
    %186 = vmatprep.subr.mxu0 0.0
    %187 = vmatpush1.xpose.msra.mxu0 %v154
    %188 = vmatprep.subr.mxu0 0.0
    %189 = vmatpush1.xpose.msra.mxu0 0.0
    %190 = vmatprep.subr.mxu0 0.0
    %191 = vmatpush1.xpose.msra.mxu0 0.0
    %192 = vmatprep.subr.mxu0 0.0
    %193 = vmatpush1.xpose.msra.mxu0 0.0
    %194 = vmatprep.subr.mxu0 0.0
    %195 = vmatpush1.xpose.msra.mxu0 0.0
    %196 = vmatprep.subr.mxu0 0.0
    %197 = vmatpush1.xpose.msra.mxu0 0.0
    %198 = vmatprep.subr.mxu0 0.0
    %199 = vmatpush1.xpose.msra.mxu0 0.0
    %200 = vmatprep.subr.mxu0 0.0
    %201 = vmatpush1.xpose.msra.mxu0 0.0
    %202 = vmatprep.subr.mxu0 0.0
    %203 = vmatpush1.xpose.msra.mxu0 0.0
    %204 = vmatprep.subr.mxu0 0.0
    %205 = vmatpush1.xpose.msra.mxu0 0.0
    %206 = vmatprep.subr.mxu0 0.0
    %207 = vmatpush1.xpose.msra.mxu0 0.0
    %208 = vmatprep.subr.mxu0 0.0
    %209 = vmatpush1.xpose.msra.mxu0 0.0
    %210 = vmatprep.subr.mxu0 0.0
    %211 = vmatpush1.xpose.msra.mxu0 0.0
    %212 = vmatprep.subr.mxu0 0.0
    %213 = vmatpush1.xpose.msra.mxu0 0.0
    %214 = vmatprep.subr.mxu0 0.0
    %215 = vmatpush1.xpose.msra.mxu0 0.0
    %216 = vmatprep.subr.mxu0 0.0
    %217 = vmatpush1.xpose.msra.mxu0 0.0
    %218 = vmatprep.subr.mxu0 0.0
    %219 = vmatpush1.xpose.msra.mxu0 0.0
    %220 = vmatprep.mubr.f32.mxu0 0.0
    %221 = vmatmul.mubr.f32.gmra.mrb[0].mxu0 %v97
    %v222 = vpop.f32.mrb[0].mxu0
    %v223 = vadd.f32 %v46, %v222
    %v224 = vpop.f32.mrb[0].mxu0
    %225 = vmatprep.mubr.f32.mxu0 0.0
    %226 = vmatmul.mubr.f32.gmra.mrb[0].mxu0 %v100
    %v227 = vpop.f32.mrb[0].mxu0
    %v228 = vadd.f32 %v51, %v227
    %v229 = vpop.f32.mrb[0].mxu0
    %230 = vmatprep.mubr.f32.mxu0 0.0
    %231 = vmatmul.mubr.f32.gmra.mrb[0].mxu0 %v103
    %v232 = vpop.f32.mrb[0].mxu0
    %v233 = vadd.f32 %v56, %v232
    %v234 = vpop.f32.mrb[0].mxu0
    %235 = vmatprep.mubr.f32.mxu0 0.0
    %236 = vmatmul.mubr.f32.gmra.mrb[0].mxu0 %v106
    %v237 = vpop.f32.mrb[0].mxu0
    %v238 = vadd.f32 %v61, %v237
    %v239 = vpop.f32.mrb[0].mxu0
    %240 = vdwg.mxu0
    %v241 = vmax.f32 %v223, 0.0
    %v242 = vmax.f32 %v228, 0.0
    %v243 = vmax.f32 %v233, 0.0
    %v244 = vmax.f32 %v238, 0.0
    %v245 = vld [vmem:[%s3] sm:$0xff]
    %v246 = vld [vmem:[%s3 + $0x8] sm:$0xff]
    %v247 = vld [vmem:[%s3 + $0x10] sm:$0xff]
    %v248 = vld [vmem:[%s3 + $0x18] sm:$0xff]
    %v249 = vld [vmem:[%s4] sm:$0xf]
    %251 = vset.pattern.permute.xlu0 0
    %252 = vperm.xlu0 %251, %v249
    %v253 = vpop.permute.xlu0 %252
    %255 = vxpose.xlu0.b32.start [1/16] %v245, 128
    %256 = vxpose.xlu0.b32.cont [2/16] %v246, 128
    %257 = vxpose.xlu0.b32.cont [3/16] %v247, 128
    %258 = vxpose.xlu0.b32.cont [4/16] %v248, 128
    %259 = vxpose.xlu0.b32.cont [5/16] 0.0, 128
    %260 = vxpose.xlu0.b32.cont [6/16] 0.0, 128
    %261 = vxpose.xlu0.b32.cont [7/16] 0.0, 128
    %262 = vxpose.xlu0.b32.cont [8/16] 0.0, 128
    %263 = vxpose.xlu0.b32.cont [9/16] 0.0, 128
    %264 = vxpose.xlu0.b32.cont [10/16] 0.0, 128
    %265 = vxpose.xlu0.b32.cont [11/16] 0.0, 128
    %266 = vxpose.xlu0.b32.cont [12/16] 0.0, 128
    %267 = vxpose.xlu0.b32.cont [13/16] 0.0, 128
    %268 = vxpose.xlu0.b32.cont [14/16] 0.0, 128
    %269 = vxpose.xlu0.b32.cont [15/16] 0.0, 128
    %270 = vxpose.xlu0.b32.end [16/16] 0.0, 128
    %v271 = vpop.trf.xlu0
    %v272 = vpop.trf.xlu0
    %v273 = vpop.trf.xlu0
    %v274 = vpop.trf.xlu0
    %v275 = vpop.trf.xlu0
    %v276 = vpop.trf.xlu0
    %v277 = vpop.trf.xlu0
    %v278 = vpop.trf.xlu0
    %v279 = vpop.trf.xlu0
    %v280 = vpop.trf.xlu0
    %v281 = vpop.trf.xlu0
    %v282 = vpop.trf.xlu0
    %v283 = vpop.trf.xlu0
    %v284 = vpop.trf.xlu0
    %v285 = vpop.trf.xlu0
    %v286 = vpop.trf.xlu0
    %vm287 = vcmask 261120
    %v289 = vsel %vm287, %v271, 0
    %291 = vmatprep.subr.mxu0 0.0
    %292 = vmatpush1.msra.mxu0 %v241
    %293 = vmatprep.subr.mxu0 0.0
    %294 = vmatpush1.msra.mxu0 %v242
    %295 = vmatprep.subr.mxu0 0.0
    %296 = vmatpush1.msra.mxu0 %v243
    %297 = vmatprep.subr.mxu0 0.0
    %298 = vmatpush1.msra.mxu0 %v244
    %299 = vmatprep.subr.mxu0 0.0
    %300 = vmatpush1.msra.mxu0 0.0
    %301 = vmatprep.subr.mxu0 0.0
    %302 = vmatpush1.msra.mxu0 0.0
    %303 = vmatprep.subr.mxu0 0.0
    %304 = vmatpush1.msra.mxu0 0.0
    %305 = vmatprep.subr.mxu0 0.0
    %306 = vmatpush1.msra.mxu0 0.0
    %307 = vmatprep.subr.mxu0 0.0
    %308 = vmatpush1.msra.mxu0 0.0
    %309 = vmatprep.subr.mxu0 0.0
    %310 = vmatpush1.msra.mxu0 0.0
    %311 = vmatprep.subr.mxu0 0.0
    %312 = vmatpush1.msra.mxu0 0.0
    %313 = vmatprep.subr.mxu0 0.0
    %314 = vmatpush1.msra.mxu0 0.0
    %315 = vmatprep.subr.mxu0 0.0
    %316 = vmatpush1.msra.mxu0 0.0
    %317 = vmatprep.subr.mxu0 0.0
    %318 = vmatpush1.msra.mxu0 0.0
    %319 = vmatprep.subr.mxu0 0.0
    %320 = vmatpush1.msra.mxu0 0.0
    %321 = vmatprep.subr.mxu0 0.0
    %322 = vmatpush1.msra.mxu0 0.0
    %323 = vmatprep.subr.mxu0 0.0
    %324 = vmatpush1.msra.mxu0 0.0
    %325 = vmatprep.subr.mxu0 0.0
    %326 = vmatpush1.msra.mxu0 0.0
    %327 = vmatprep.subr.mxu0 0.0
    %328 = vmatpush1.msra.mxu0 0.0
    %329 = vmatprep.subr.mxu0 0.0
    %330 = vmatpush1.msra.mxu0 0.0
    %331 = vmatprep.subr.mxu0 0.0
    %332 = vmatpush1.msra.mxu0 0.0
    %333 = vmatprep.subr.mxu0 0.0
    %334 = vmatpush1.msra.mxu0 0.0
    %335 = vmatprep.subr.mxu0 0.0
    %336 = vmatpush1.msra.mxu0 0.0
    %337 = vmatprep.subr.mxu0 0.0
    %338 = vmatpush1.msra.mxu0 0.0
    %339 = vmatprep.subr.mxu0 0.0
    %340 = vmatpush1.msra.mxu0 0.0
    %341 = vmatprep.subr.mxu0 0.0
    %342 = vmatpush1.msra.mxu0 0.0
    %343 = vmatprep.subr.mxu0 0.0
    %344 = vmatpush1.msra.mxu0 0.0
    %345 = vmatprep.subr.mxu0 0.0
    %346 = vmatpush1.msra.mxu0 0.0
    %347 = vmatprep.subr.mxu0 0.0
    %348 = vmatpush1.msra.mxu0 0.0
    %349 = vmatprep.subr.mxu0 0.0
    %350 = vmatpush1.msra.mxu0 0.0
    %351 = vmatprep.subr.mxu0 0.0
    %352 = vmatpush1.msra.mxu0 0.0
    %353 = vmatprep.subr.mxu0 0.0
    %354 = vmatpush1.msra.mxu0 0.0
    %355 = vmatprep.mubr.f32.mxu0 0.0
    %356 = vmatmul.mubr.f32.gmra.mrb[0].mxu0 %v289
    %v357 = vpop.f32.mrb[0].mxu0
    %v358 = vadd.f32 %v253, %v357
    %v359 = vpop.f32.mrb[0].mxu0
    %360 = vdwg.mxu0
    %361 = vst [vmem:[#allocation2] sm:$0xf] %v358
    // Predicated region
    $region22: #{tpu_custom_call.1} parent=1 // pred_check
      _
    $region23: #{tpu_custom_call.1} parent=1 // pred_check_branch
      %363 = sbr.rel (0) target = $region25
    $region24: #{tpu_custom_call.1} parent=1 // pred_region
      %s365 = ssub.s32 64, 64
      %366 = vsyncadd [#allocation3], %s365
      %s368 = sshll.u32 [#allocation2], 4
      %s369 = int_to_ptr.vmem [resolvable:$true] %s368
      %371 = dma.vmem_to_hbm [thread:$0]  %s369, 64, %s5, [#allocation3]
    $region25: #{tpu_custom_call.1} parent=1 // pred_fallthru
      _
    // Predicated region
    $region26: #{tpu_custom_call.1} parent=1 // pred_check
      _
    $region27: #{tpu_custom_call.1} parent=1 // pred_check_branch
      %373 = sbr.rel (0) target = $region29
    $region28: #{tpu_custom_call.1} parent=1 // pred_region
      %374 = dma.done [#allocation3], 64
    $region29: #{tpu_custom_call.1} parent=1 // pred_fallthru
      _
    %375 = vsyncpa [#allocation3], 1

</llo_original>
